<compile_context>
chip_gen: v5e
topology: v5e:2x2
jax: 0.10.0
libtpu: 0.0.40
codegen_flags: <defaults>
</compile_context>

<pallas_src>
import math

import jax
import jax.numpy as jnp
from jax import lax
from jax.experimental import pallas as pl
from jax.experimental.pallas import tpu as pltpu

_LANE = 128


def _round_up(n, m):
    return ((n + m - 1) // m) * m


def glm_kernel(x_ref, w_ref, b_ref, o_ref):
    """One reduction step of y = x @ W^T + b.

    x_ref : [B, tk]  chunk of flattened input  (lane axis = D)
    w_ref : [O, tk]  chunk of the UNtransposed weight (lane axis = D)
    b_ref : [1, O]   bias (resident)
    o_ref : [B, O]   f32 output, resident across the reduction axis
    """
    k = pl.program_id(0)

    @pl.when(k == 0)
    def _init():
        o_ref[...] = jnp.zeros_like(o_ref)

    if o_ref.shape[1] == 1:
        # GEMV (O == 1): VPU elementwise multiply + XLU lane reduction.
        # The MXU would be <1% utilized and only add push/pop latency.
        x = x_ref[...].astype(jnp.float32)
        w = w_ref[...].astype(jnp.float32)     # [1, tk] broadcasts over rows
        partial = jnp.sum(x * w, axis=-1, keepdims=True)
    else:
        # General case: contract lane axes of x [B,tk] and w [O,tk] on the MXU.
        partial = lax.dot_general(
            x_ref[...], w_ref[...],
            dimension_numbers=(((1,), (1,)), ((), ())),
            preferred_element_type=jnp.float32,
        )

    o_ref[...] = o_ref[...] + partial

    @pl.when(k == pl.num_programs(0) - 1)
    def _finalize():
        o_ref[...] = o_ref[...] + b_ref[...]


def glm_forward(x, weight, bias, *, vmem_budget_bytes=8 * 1024 * 1024):
    """Pallas GLM forward.

    x      : [B, C, H, W] (any float/int dtype)
    weight : [O, D]  with D = C*H*W   (nn.Linear weight, NOT transposed)
    bias   : [O]
    returns: [B, 1, O] float32
    """
    B = int(x.shape[0])
    D = math.prod(int(s) for s in x.shape[1:])
    O = int(weight.shape[0])
    assert int(weight.shape[1]) == D, (
        f"weight dim {weight.shape[1]} != flattened input dim {D}")

    # Match `.float()` for non-float inputs; stream floats in native dtype
    # (bf16 halves HBM traffic) and accumulate in f32 inside the kernel.
    if not jnp.issubdtype(x.dtype, jnp.floating):
        x = x.astype(jnp.float32)
    if not jnp.issubdtype(weight.dtype, jnp.floating):
        weight = weight.astype(jnp.float32)

    x2 = x.reshape(B, D)                          # [B, D]
    w2 = weight                                   # [O, D] (lane-dense along D)
    b2 = bias.astype(jnp.float32).reshape(1, O)   # [1, O]

    # --- reduction tiling over D --------------------------------------------
    # Bytes streamed per reduction-lane with double buffering: 2*(B+O) rows.
    itemsize = max(x2.dtype.itemsize, w2.dtype.itemsize)
    bytes_per_lane = 2 * (B + O) * itemsize
    tk_max = max(_LANE, (vmem_budget_bytes // bytes_per_lane) // _LANE * _LANE)

    Dp = _round_up(D, _LANE)
    if Dp <= tk_max:
        tk = Dp                 # everything fits: single reduction step
    else:
        tk = tk_max             # few large lane-aligned steps
        Dp = _round_up(D, tk)
    nk = Dp // tk

    # Zero-pad the reduction axis so every block stays (8,128)-aligned.
    # Padded lanes multiply against zero weight rows -> no effect on the sum.
    if Dp != D:
        x2 = jnp.pad(x2, ((0, 0), (0, Dp - D)))
        w2 = jnp.pad(w2, ((0, 0), (0, Dp - D)))

    out2 = pl.pallas_call(
        glm_kernel,
        out_shape=jax.ShapeDtypeStruct((B, O), jnp.float32),
        grid_spec=pltpu.PrefetchScalarGridSpec(
            num_scalar_prefetch=0,
            grid=(nk,),
            in_specs=[
                pl.BlockSpec((B, tk), lambda k: (0, k)),   # x chunk
                pl.BlockSpec((O, tk), lambda k: (0, k)),   # weight chunk
                pl.BlockSpec((1, O), lambda k: (0, 0)),    # bias (resident)
            ],
            out_specs=pl.BlockSpec((B, O), lambda k: (0, 0)),
        ),
        compiler_params=pltpu.CompilerParams(
            # Single reduction axis with a resident output block.
            # TODO(synk): add a leading "parallel" batch axis for v7x megacore
            # once B is large enough to be worth splitting (not for B=2).
            dimension_semantics=("arbitrary",),
        ),
    )(x2, w2, b2)

    return out2.reshape(B, 1, O)


if __name__ == "__main__":
    # Small shapes consistent with the module: x [B, C, H, W], D = C*H*W.
    B, C, H, W = 2, 4, 16, 16
    D = C * H * W          # 1024 (stand-in for 100*10*62)
    O = 1                  # output_dim

    key = jax.random.PRNGKey(0)
    kx, kw, kb = jax.random.split(key, 3)

    x = jax.random.normal(kx, (B, C, H, W), dtype=jnp.float32)

    # Deterministic nn.Linear-style init: U(-1/sqrt(D), 1/sqrt(D)).
    bound = 1.0 / (D ** 0.5)
    weight = jax.random.uniform(kw, (O, D), minval=-bound, maxval=bound,
                                dtype=jnp.float32)
    bias = jax.random.uniform(kb, (O,), minval=-bound, maxval=bound,
                              dtype=jnp.float32)

    out = glm_forward(x, weight, bias)
    out = jax.block_until_ready(out)

    # Reference check in plain JAX.
    ref = x.reshape(B, 1, D).astype(jnp.float32) @ weight.T + bias
    assert out.shape == (B, 1, O), out.shape
    assert jnp.allclose(out, ref, atol=1e-4, rtol=1e-4), (out, ref)

    print("KERNEL_OK")
</pallas_src>

<mosaic_0001>
module attributes {stable_mosaic.version = 11 : i64} {
  func.func @glm_kernel(%arg0: i32, %arg1: memref<2x1024xf32, #tpu.memory_space<vmem>>, %arg2: memref<1x1024xf32, #tpu.memory_space<vmem>>, %arg3: memref<1x1xf32, #tpu.memory_space<vmem>>, %arg4: memref<2x1xf32, #tpu.memory_space<vmem>>) attributes {dimension_semantics = [#tpu.dimension_semantics<arbitrary>], iteration_bounds = array<i64: 1>, scalar_prefetch = 0 : i64, scratch_operands = 0 : i64, tpu.core_type = #tpu.core_type<tc>, window_params = [{transform_indices = @transform_0, window_bounds = array<i64: 2, 1024>}, {transform_indices = @transform_1, window_bounds = array<i64: 1, 1024>}, {pipeline_mode = #tpu.pipeline_mode<synchronous>, transform_indices = @transform_2, window_bounds = array<i64: 1, 1>}, {pipeline_mode = #tpu.pipeline_mode<synchronous>, transform_indices = @transform_3, window_bounds = array<i64: 2, 1>}]} {
    %c0_i32 = arith.constant 0 : i32
    %0 = arith.cmpi eq, %arg0, %c0_i32 : i32
    %1 = arith.extui %0 : i1 to i32
    %c0_i32_0 = arith.constant 0 : i32
    %2 = arith.cmpi ne, %1, %c0_i32_0 : i32
    scf.if %2 {
      %cst_10 = arith.constant 0.000000e+00 : f32
      %15 = vector.broadcast %cst_10 : f32 to vector<2x1xf32>
      %c0_11 = arith.constant 0 : index
      %c0_12 = arith.constant 0 : index
      %16 = vector.load %arg4[%c0_11, %c0_12] : memref<2x1xf32, #tpu.memory_space<vmem>>, vector<2x1xf32>
      tpu.vector_store %arg4[%c0_11, %c0_12], %15 {strides = array<i32>} : memref<2x1xf32, #tpu.memory_space<vmem>>, vector<2x1xf32>,
    } else {
    }
    %c0 = arith.constant 0 : index
    %c0_1 = arith.constant 0 : index
    %3 = vector.load %arg1[%c0, %c0_1] : memref<2x1024xf32, #tpu.memory_space<vmem>>, vector<2x1024xf32>
    %c0_2 = arith.constant 0 : index
    %c0_3 = arith.constant 0 : index
    %4 = vector.load %arg2[%c0_2, %c0_3] : memref<1x1024xf32, #tpu.memory_space<vmem>>, vector<1x1024xf32>
    %5 = vector.broadcast %4 : vector<1x1024xf32> to vector<2x1024xf32>
    %6 = arith.mulf %3, %5 : vector<2x1024xf32>
    %cst = arith.constant dense<0.000000e+00> : vector<2xf32>
    %7 = vector.multi_reduction <add>, %6, %cst [1] : vector<2x1024xf32> to vector<2xf32>
    %8 = vector.shape_cast %7 : vector<2xf32> to vector<2x1xf32>
    %c0_4 = arith.constant 0 : index
    %c0_5 = arith.constant 0 : index
    %9 = vector.load %arg4[%c0_4, %c0_5] : memref<2x1xf32, #tpu.memory_space<vmem>>, vector<2x1xf32>
    %10 = arith.addf %9, %8 : vector<2x1xf32>
    %c0_6 = arith.constant 0 : index
    %c0_7 = arith.constant 0 : index
    %11 = vector.load %arg4[%c0_6, %c0_7] : memref<2x1xf32, #tpu.memory_space<vmem>>, vector<2x1xf32>
    tpu.vector_store %arg4[%c0_6, %c0_7], %10 {strides = array<i32>} : memref<2x1xf32, #tpu.memory_space<vmem>>, vector<2x1xf32>,
    %c0_i32_8 = arith.constant 0 : i32
    %12 = arith.cmpi eq, %arg0, %c0_i32_8 : i32
    %13 = arith.extui %12 : i1 to i32
    %c0_i32_9 = arith.constant 0 : i32
    %14 = arith.cmpi ne, %13, %c0_i32_9 : i32
    scf.if %14 {
      %c0_10 = arith.constant 0 : index
      %c0_11 = arith.constant 0 : index
      %15 = vector.load %arg4[%c0_10, %c0_11] : memref<2x1xf32, #tpu.memory_space<vmem>>, vector<2x1xf32>
      %c0_12 = arith.constant 0 : index
      %c0_13 = arith.constant 0 : index
      %16 = vector.load %arg3[%c0_12, %c0_13] : memref<1x1xf32, #tpu.memory_space<vmem>>, vector<1x1xf32>
      %17 = vector.broadcast %16 : vector<1x1xf32> to vector<2x1xf32>
      %18 = arith.addf %15, %17 : vector<2x1xf32>
      %c0_14 = arith.constant 0 : index
      %c0_15 = arith.constant 0 : index
      %19 = vector.load %arg4[%c0_14, %c0_15] : memref<2x1xf32, #tpu.memory_space<vmem>>, vector<2x1xf32>
      tpu.vector_store %arg4[%c0_14, %c0_15], %18 {strides = array<i32>} : memref<2x1xf32, #tpu.memory_space<vmem>>, vector<2x1xf32>,
    } else {
    }
    return
  }
  func.func @transform_0(%arg0: i32) -> (i32, i32) {
    %c0_i32 = arith.constant 0 : i32
    %c0_i32_0 = arith.constant 0 : i32
    return %c0_i32, %arg0 : i32, i32
  }
  func.func @transform_1(%arg0: i32) -> (i32, i32) {
    %c0_i32 = arith.constant 0 : i32
    %c0_i32_0 = arith.constant 0 : i32
    return %c0_i32, %arg0 : i32, i32
  }
  func.func @transform_2(%arg0: i32) -> (i32, i32) {
    %c0_i32 = arith.constant 0 : i32
    %c0_i32_0 = arith.constant 0 : i32
    %c0_i32_1 = arith.constant 0 : i32
    return %c0_i32, %c0_i32_0 : i32, i32
  }
  func.func @transform_3(%arg0: i32) -> (i32, i32) {
    %c0_i32 = arith.constant 0 : i32
    %c0_i32_0 = arith.constant 0 : i32
    %c0_i32_1 = arith.constant 0 : i32
    return %c0_i32, %c0_i32_0 : i32, i32
  }
}

</mosaic_0001>

<llo_original>
// kernel: tpu_custom_call.1
$region0: #{tpu_custom_call.1}
  #allocation0 [shape = 'u32[]', space=smem, size = 0x4, offset = 0x4, fixed_abs, tag = 'smem constant byte address 0x4 - core index']
  #allocation1 [shape = 'u32[72,128]{1,0:T(1,128)}', space=vmem, size = 0x9000, scoped, tag = 'internal scratch']
  #allocation2 [shape = 'f32[1,1]{1,0:T(1,128)S(1)}', space=vmem, size = 0x200, scoped, tag = 'scoped memory for tpu_custom_call.1']
  %s0 = inlined_call_operand.hbm [shape: f32[2,1024], index: 0, kind: input, shape index: {}]
  %s1 = inlined_call_operand.hbm [shape: f32[1,1024], index: 1, kind: input, shape index: {}]
  %s2 = inlined_call_operand.<no memory space> [shape: f32[1,1], index: 2, kind: input, shape index: {}]
  %s3 = inlined_call_operand.vmem [shape: f32[2,1], index: 3, kind: output, shape index: {}]
  %s4 = sld [smem:[#allocation0]]
  $region38: #{tpu_custom_call.1} parent=0
    _
  %s6 = ssub.s32 1, %s4
  %s7 = scalar_select 0, %s6, %s4
  %v8 = vstv %s2
  %9 = vst [vmem:[#allocation2] sm:$0x1] %v8
  $region1: #{tpu_custom_call.1} parent=0
    #allocation3 [shape = 'u8[8192]{0}', space=vmem, size = 0x2000, scoped, tag = 'input window, operand 0, single buffered']
    #allocation4 [shape = 's32[1]{0}', space=sflag, size = 0x4, scoped, tag = 'scoped memory for tpu_custom_call.1']
    #allocation5 [shape = 'u8[4096]{0}', space=vmem, size = 0x1000, scoped, tag = 'input window, operand 1, single buffered']
    #allocation6 [shape = 's32[1]{0}', space=sflag, size = 0x4, scoped, tag = 'scoped memory for tpu_custom_call.1']
    %10 = vsyncpa [#allocation4], 0
    %11 = vsyncpa [#allocation6], 0
    // Predicated region
    $region2: #{tpu_custom_call.1} parent=1 // pred_check
      _
    $region3: #{tpu_custom_call.1} parent=1 // pred_check_branch
      %13 = sbr.rel (0) target = $region5
    $region4: #{tpu_custom_call.1} parent=1 // pred_region
      %15 = vsyncadd [#allocation4], 0
      %s17 = sshll.u32 %s0, 4
      %s18 = int_to_ptr.hbm [resolvable:$true] %s17
      %s19 = sshll.u32 [#allocation3], 4
      %s20 = int_to_ptr.vmem [resolvable:$true] %s19
      %22 = dma.hbm_to_vmem [thread:$0]  %s18, 256, %s20, [#allocation4]
    $region5: #{tpu_custom_call.1} parent=1 // pred_fallthru
      _
    // Predicated region
    $region6: #{tpu_custom_call.1} parent=1 // pred_check
      _
    $region7: #{tpu_custom_call.1} parent=1 // pred_check_branch
      %24 = sbr.rel (0) target = $region9
    $region8: #{tpu_custom_call.1} parent=1 // pred_region
      %26 = vsyncadd [#allocation6], 0
      %s28 = sshll.u32 %s1, 4
      %s29 = int_to_ptr.hbm [resolvable:$true] %s28
      %s30 = sshll.u32 [#allocation5], 4
      %s31 = int_to_ptr.vmem [resolvable:$true] %s30
      %33 = dma.hbm_to_vmem [thread:$0]  %s29, 128, %s31, [#allocation6]
    $region9: #{tpu_custom_call.1} parent=1 // pred_fallthru
      _
    // Predicated region
    $region10: #{tpu_custom_call.1} parent=1 // pred_check
      _
    $region11: #{tpu_custom_call.1} parent=1 // pred_check_branch
      %35 = sbr.rel (0) target = $region13
    $region12: #{tpu_custom_call.1} parent=1 // pred_region
      _
    $region13: #{tpu_custom_call.1} parent=1 // pred_fallthru
      _
    // Predicated region
    $region14: #{tpu_custom_call.1} parent=1 // pred_check
      _
    $region15: #{tpu_custom_call.1} parent=1 // pred_check_branch
      %37 = sbr.rel (0) target = $region17
    $region16: #{tpu_custom_call.1} parent=1 // pred_region
      %39 = dma.done [#allocation4], 256
    $region17: #{tpu_custom_call.1} parent=1 // pred_fallthru
      _
    // Predicated region
    $region18: #{tpu_custom_call.1} parent=1 // pred_check
      _
    $region19: #{tpu_custom_call.1} parent=1 // pred_check_branch
      %41 = sbr.rel (0) target = $region21
    $region20: #{tpu_custom_call.1} parent=1 // pred_region
      %43 = dma.done [#allocation6], 128
    $region21: #{tpu_custom_call.1} parent=1 // pred_fallthru
      _
    %p44 = scmp.eq.s32.totalorder 0, 0
    // Predicated region
    $region22: #{tpu_custom_call.1} parent=1 // pred_check
      %p45 = pneg %p44
    $region23: #{tpu_custom_call.1} parent=1 // pred_check_branch
      %47 = sbr.rel (%p45) target = $region25
    $region24: #{tpu_custom_call.1} parent=1 // pred_region
      %vm48 = vcmask 1024
      %49 = vst.msk [vmem:[%s3] sm:$0x3] %vm48, 0.0
    $region25: #{tpu_custom_call.1} parent=1 // pred_fallthru
      _
    %v50 = vld [vmem:[#allocation3] sm:$0xff]
    %v51 = vld [vmem:[#allocation3 + $0x8] sm:$0xff]
    %v52 = vld [vmem:[#allocation5] sm:$0xff]
    %v54 = vperm.slane %v52, 0
    %v55 = vperm.slane %v52, 1
    %v56 = vperm.slane %v52, 2
    %v57 = vperm.slane %v52, 3
    %v58 = vperm.slane %v52, 4
    %v59 = vperm.slane %v52, 5
    %v60 = vperm.slane %v52, 6
    %v61 = vperm.slane %v52, 7
    %v62 = vrot.slane %v55, 6
    %v63 = vrot.slane %v56, 4
    %v64 = vrot.slane %v57, 2
    %v65 = vrot.slane %v59, 6
    %v66 = vrot.slane %v60, 4
    %v67 = vrot.slane %v61, 2
    %vm68 = vcmask 1041408
    %v69 = vsel %vm68, %v54, %v62
    %vm70 = vcmask 1045508
    %v71 = vsel %vm70, %v63, %v64
    %vm72 = vcmask 1043456
    %v73 = vsel %vm72, %v69, %v71
    %v74 = vsel %vm68, %v58, %v65
    %v75 = vsel %vm70, %v66, %v67
    %v76 = vsel %vm72, %v74, %v75
    %v79 = vmul.f32 %v50, %v73
    %v80 = vmul.f32 %v51, %v76
    %83 = vst [vmem:[#allocation1] ss:$4 sm:$0xff] %v79
    %s84 = scalar_lea.vmem [#allocation1], 32
    %85 = vst [vmem:[%s84] ss:$4 sm:$0xff] %v80
    %v86 = vld.sshfl [vmem:[#allocation1] sm:$0xff pattern:$0x73625140]
    %v87 = vld.sshfl [vmem:[#allocation1 + $0x8] sm:$0xff pattern:$0x73625140]
    %v88 = vld.sshfl [vmem:[#allocation1 + $0x10] sm:$0xff pattern:$0x73625140]
    %v89 = vld.sshfl [vmem:[#allocation1 + $0x18] sm:$0xff pattern:$0x73625140]
    %v90 = vld.sshfl [vmem:[#allocation1 + $0x20] sm:$0xff pattern:$0x73625140]
    %v91 = vld.sshfl [vmem:[#allocation1 + $0x28] sm:$0xff pattern:$0x73625140]
    %v92 = vld.sshfl [vmem:[#allocation1 + $0x30] sm:$0xff pattern:$0x73625140]
    %v93 = vld.sshfl [vmem:[#allocation1 + $0x38] sm:$0xff pattern:$0x73625140]
    %v102 = vsel %vm68, %v86, 0.0
    %v103 = vsel %vm68, %v87, 0.0
    %v104 = vadd.f32 %v102, %v103
    %v105 = vsel %vm68, %v88, 0.0
    %v106 = vadd.f32 %v104, %v105
    %v107 = vsel %vm68, %v89, 0.0
    %v108 = vadd.f32 %v106, %v107
    %v109 = vsel %vm68, %v90, 0.0
    %v110 = vadd.f32 %v108, %v109
    %v111 = vsel %vm68, %v91, 0.0
    %v112 = vadd.f32 %v110, %v111
    %v113 = vsel %vm68, %v92, 0.0
    %v114 = vadd.f32 %v112, %v113
    %v115 = vsel %vm68, %v93, 0.0
    %v116 = vadd.f32 %v114, %v115
    %117 = vadd.xlane.f32.xlu0 %v116
    %v118 = vpop.xlane.xlu0 %117
    %v119 = vld [vmem:[%s3] sm:$0x3]
    %v120 = vadd.f32 %v119, %v118
    %vm121 = vcmask 1024
    %122 = vst.msk [vmem:[%s3] sm:$0x3] %vm121, %v120
    // Predicated region
    $region26: #{tpu_custom_call.1} parent=1 // pred_check
      %p123 = pneg %p44
    $region27: #{tpu_custom_call.1} parent=1 // pred_check_branch
      %125 = sbr.rel (%p123) target = $region29
    $region28: #{tpu_custom_call.1} parent=1 // pred_region
      %v126 = vld [vmem:[%s3] sm:$0x3]
      %v127 = vld [vmem:[#allocation2] sm:$0x1]
      %v129 = vperm.slane %v127, 0
      %v131 = vadd.f32 %v126, %v129
      %132 = vst.msk [vmem:[%s3] sm:$0x3] %vm121, %v131
    $region29: #{tpu_custom_call.1} parent=1 // pred_fallthru
      _
    // Predicated region
    $region30: #{tpu_custom_call.1} parent=1 // pred_check
      _
    $region31: #{tpu_custom_call.1} parent=1 // pred_check_branch
      %134 = sbr.rel (0) target = $region33
    $region32: #{tpu_custom_call.1} parent=1 // pred_region
      _
    $region33: #{tpu_custom_call.1} parent=1 // pred_fallthru
      _
    // Predicated region
    $region34: #{tpu_custom_call.1} parent=1 // pred_check
      _
    $region35: #{tpu_custom_call.1} parent=1 // pred_check_branch
      %136 = sbr.rel (0) target = $region37
    $region36: #{tpu_custom_call.1} parent=1 // pred_region
      _
    $region37: #{tpu_custom_call.1} parent=1 // pred_fallthru
      _
    %137 = vsyncpa [#allocation4], 1
    %138 = vsyncpa [#allocation6], 1

</llo_original>
